<compile_context>
chip_gen: v5e
topology: v5e:2x2
jax: 0.10.0
libtpu: 0.0.40
codegen_flags: <defaults>
</compile_context>

<pallas_src>
import functools

import jax
import jax.numpy as jnp
from jax.experimental import pallas as pl
from jax.experimental.pallas import tpu as pltpu

GAMMA = 2.0


def _int_pow(x, p):
    """x**p for a small non-negative Python int p, via multiplies only."""
    result = None
    base = x
    while p:
        if p & 1:
            result = base if result is None else result * base
        p >>= 1
        if p:
            base = base * base
    return jnp.ones_like(x) if result is None else result


def _focal_loss_kernel(
    x_ref,
    t_ref,
    o_ref,
    *,
    gamma,
    n_rows,
    tile_rows,
    inner_steps,
    total_tiles,
    acc_rows,
    binary_targets,
):
    outer = pl.program_id(0)
    inner = pl.program_id(1)

    # Fresh accumulator block at the start of each outer (parallel) index.
    @pl.when(inner == 0)
    def _():
        o_ref[...] = jnp.zeros_like(o_ref)

    x = x_ref[...].astype(jnp.float32)
    t = t_ref[...].astype(jnp.float32)

    xt = x * t
    e_x = jnp.exp(-jnp.abs(x))                           # EUP: exp
    # x - x*t + max(-x,0) + log(exp(-mv)+exp(-x-mv)) == max(x,0) - x*t + log1p(exp(-|x|))
    bce = jnp.maximum(x, 0.0) - xt + jnp.log1p(e_x)      # EUP: log1p

    # z = -x * (2t - 1) == x - 2*(x*t); reuse the x*t product.
    z = x - 2.0 * xt
    if binary_targets:
        # Hard 0/1 targets => |z| == |x|, so exp(-|z|) == exp(-|x|).
        e_z = e_x
    else:
        e_z = jnp.exp(-jnp.abs(z))                       # EUP: exp

    g = float(gamma)
    if g >= 0.0 and g == int(g):
        # exp(gamma * logsigmoid(z)) == sigmoid(z)**gamma for integer gamma:
        # one approx reciprocal (+ Newton polish on the VPU) replaces
        # log1p + exp.  sigmoid(z) = where(z<0, e_z, 1) / (1 + e_z), stable.
        denom = 1.0 + e_z
        inv = pl.reciprocal(denom, approx=True)          # EUP: cheap vrcp
        inv = inv * (2.0 - denom * inv)                  # 1 NR step -> ~f32 exact
        sig = jnp.where(z < 0.0, e_z, 1.0) * inv
        weight = _int_pow(sig, int(g))
    else:
        # General (non-integer) gamma: exact logsigmoid path.
        invprobs = jnp.minimum(z, 0.0) - jnp.log1p(e_z)  # EUP: log1p
        weight = jnp.exp(g * invprobs)                   # EUP: exp

    loss = weight * bce

    def accumulate(val):
        # Fold (tile_rows, C) -> (acc_rows, C) partial sums: pure VPU adds,
        # acc_rows/8 independent vreg add chains per lane column (no XLU).
        r, c = val.shape
        if r % acc_rows != 0:
            pad = jnp.zeros((acc_rows - r % acc_rows, c), jnp.float32)
            val = jnp.concatenate([val, pad], axis=0)
        o_ref[...] += val.reshape(-1, acc_rows, c).sum(axis=0)

    tail_rows = n_rows - (total_tiles - 1) * tile_rows
    if tail_rows == tile_rows:
        # Batch divides evenly into tiles: no masking anywhere.
        accumulate(loss)
    else:
        # Only the single ragged last tile pays for iota + compare + where.
        gtile = outer * inner_steps + inner
        is_last = gtile == (total_tiles - 1)

        @pl.when(is_last)
        def _():
            rows = jax.lax.broadcasted_iota(jnp.int32, (loss.shape[0], 1), 0)
            accumulate(jnp.where(rows < tail_rows, loss, 0.0))

        @pl.when(jnp.logical_not(is_last))
        def _():
            accumulate(loss)


def focal_loss(
    inputs,
    targets,
    gamma=GAMMA,
    tile_rows=None,
    num_outer=None,
    assume_binary_targets=False,
):
    if inputs.shape != targets.shape:
        raise ValueError(
            "Target size ({}) must be the same as input size ({})".format(
                targets.shape, inputs.shape
            )
        )
    n, c = inputs.shape

    # Tile choice: ~2 MiB of f32 per input buffer per grid step (rows a
    # multiple of 64 so the (64, C) fold needs no padding on full tiles).
    if tile_rows is None:
        target_elems = 512 * 1024
        target_rows = max(64, ((target_elems // max(c, 1)) // 64) * 64)
        if n >= 64:
            tile_rows = min(target_rows, (n // 64) * 64)
        elif n >= 8:
            tile_rows = (n // 8) * 8
        else:
            tile_rows = n

    total_tiles = pl.cdiv(n, tile_rows)

    # Leading "parallel" axis for v7x megacore; only used when it divides the
    # tile count exactly so the index_map never duplicates an HBM block
    # (on 1-TC chips the extra tiny accumulator block is negligible).
    if num_outer is None:
        num_outer = 2 if (total_tiles >= 2 and total_tiles % 2 == 0) else 1
    else:
        num_outer = max(1, min(int(num_outer), total_tiles))
        if total_tiles % num_outer != 0:
            num_outer = 1
    inner_steps = total_tiles // num_outer

    # Resident accumulator height: 64 rows (8 vregs at C=128) for wide tiles.
    acc_rows = 64 if tile_rows >= 64 else max(8, ((tile_rows + 7) // 8) * 8)

    def in_map(o, i):
        return (o * inner_steps + i, 0)

    kernel = functools.partial(
        _focal_loss_kernel,
        gamma=float(gamma),
        n_rows=n,
        tile_rows=tile_rows,
        inner_steps=inner_steps,
        total_tiles=total_tiles,
        acc_rows=acc_rows,
        binary_targets=bool(assume_binary_targets),
    )

    itemsize = inputs.dtype.itemsize + targets.dtype.itemsize
    cost = pl.CostEstimate(
        flops=18 * n * c,
        transcendentals=4 * n * c,
        bytes_accessed=n * c * itemsize + num_outer * acc_rows * c * 4,
    )

    partials = pl.pallas_call(
        kernel,
        out_shape=jax.ShapeDtypeStruct((num_outer, acc_rows, c), jnp.float32),
        grid_spec=pltpu.PrefetchScalarGridSpec(
            num_scalar_prefetch=0,
            grid=(num_outer, inner_steps),
            in_specs=[
                pl.BlockSpec((tile_rows, c), in_map),
                pl.BlockSpec((tile_rows, c), in_map),
            ],
            out_specs=pl.BlockSpec((None, acc_rows, c), lambda o, i: (o, 0, 0)),
        ),
        compiler_params=pltpu.CompilerParams(
            dimension_semantics=("parallel", "arbitrary"),
            vmem_limit_bytes=48 * 1024 * 1024,
        ),
        cost_estimate=cost,
    )(inputs, targets)

    # Tiny final reduction + mean in plain XLA.
    return jnp.sum(partials) / jnp.float32(n)


def focal_loss_ref(inputs, targets, gamma=GAMMA):
    x = inputs.astype(jnp.float32)
    t = targets.astype(jnp.float32)
    max_val = jnp.maximum(-x, 0.0)
    loss = x - x * t + max_val + jnp.log(jnp.exp(-max_val) + jnp.exp(-x - max_val))
    invprobs = jax.nn.log_sigmoid(-x * (t * 2.0 - 1.0))
    loss = jnp.exp(invprobs * gamma) * loss
    return loss.sum(axis=1).mean()


if __name__ == "__main__":
    key = jax.random.PRNGKey(0)

    # Case 1: small, evenly divisible batch (single tile, no tail path).
    k1, k2 = jax.random.split(key)
    N, C = 16, 128
    logits = jax.random.normal(k1, (N, C), dtype=jnp.float32) * 2.0
    labels = (jax.random.uniform(k2, (N, C)) > 0.5).astype(jnp.float32)
    out = jax.block_until_ready(focal_loss(logits, labels))
    ref = focal_loss_ref(logits, labels)
    assert jnp.allclose(out, ref, rtol=1e-4, atol=1e-4), (out, ref)

    # Case 2: ragged batch -> 2 tiles, exact 2-wide outer split + gated tail
    # mask; also exercises the binary-target exp reuse.
    k3, k4 = jax.random.split(k2)
    N2, C2 = 100, 128
    logits2 = jax.random.normal(k3, (N2, C2), dtype=jnp.float32) * 2.0
    labels2 = (jax.random.uniform(k4, (N2, C2)) > 0.5).astype(jnp.float32)
    out2 = jax.block_until_ready(
        focal_loss(logits2, labels2, assume_binary_targets=True)
    )
    ref2 = focal_loss_ref(logits2, labels2)
    assert jnp.allclose(out2, ref2, rtol=1e-4, atol=1e-4), (out2, ref2)

    # Case 3: bf16 inputs (HBM-bound chips feed half the bytes; kernel upcasts).
    k5, k6 = jax.random.split(k4)
    N3, C3 = 64, 128
    logits3 = (jax.random.normal(k5, (N3, C3), dtype=jnp.float32) * 2.0).astype(
        jnp.bfloat16
    )
    labels3 = (jax.random.uniform(k6, (N3, C3)) > 0.5).astype(jnp.bfloat16)
    out3 = jax.block_until_ready(focal_loss(logits3, labels3))
    ref3 = focal_loss_ref(logits3, labels3)
    assert jnp.allclose(out3, ref3, rtol=1e-3, atol=1e-3), (out3, ref3)

    # Case 4: non-integer gamma -> exact exp(gamma*logsigmoid) fallback path.
    k7, k8 = jax.random.split(k6)
    N4, C4 = 32, 128
    logits4 = jax.random.normal(k7, (N4, C4), dtype=jnp.float32) * 2.0
    labels4 = (jax.random.uniform(k8, (N4, C4)) > 0.5).astype(jnp.float32)
    out4 = jax.block_until_ready(focal_loss(logits4, labels4, gamma=1.5))
    ref4 = focal_loss_ref(logits4, labels4, gamma=1.5)
    assert jnp.allclose(out4, ref4, rtol=1e-4, atol=1e-4), (out4, ref4)

    print("KERNEL_OK")
</pallas_src>

<mosaic_0001>
module attributes {stable_mosaic.version = 11 : i64} {
  func.func @_focal_loss_kernel(%arg0: i32, %arg1: i32, %arg2: memref<16x128xf32, #tpu.memory_space<vmem>>, %arg3: memref<16x128xf32, #tpu.memory_space<vmem>>, %arg4: memref<1x16x128xf32, #tpu.memory_space<vmem>>) attributes {dimension_semantics = [#tpu.dimension_semantics<parallel>, #tpu.dimension_semantics<arbitrary>], iteration_bounds = array<i64: 1, 1>, scalar_prefetch = 0 : i64, scratch_operands = 0 : i64, tpu.core_type = #tpu.core_type<tc>, window_params = [{transform_indices = @transform_0, window_bounds = array<i64: 16, 128>}, {transform_indices = @transform_1, window_bounds = array<i64: 16, 128>}, {transform_indices = @transform_2, window_bounds = array<i64: 1, 16, 128>}]} {
    %c0_i32 = arith.constant 0 : i32
    %0 = arith.cmpi eq, %arg1, %c0_i32 : i32
    %1 = arith.extui %0 : i1 to i32
    %c0_i32_0 = arith.constant 0 : i32
    %2 = arith.cmpi ne, %1, %c0_i32_0 : i32
    scf.if %2 {
      %cst_18 = arith.constant 0.000000e+00 : f32
      %44 = vector.broadcast %cst_18 : f32 to vector<16x128xf32>
      %c0_19 = arith.constant 0 : index
      %c0_20 = arith.constant 0 : index
      %c0_21 = arith.constant 0 : index
      %45 = vector.load %arg4[%c0_19, %c0_20, %c0_21] : memref<1x16x128xf32, #tpu.memory_space<vmem>>, vector<1x16x128xf32>
      %46 = vector.shape_cast %45 : vector<1x16x128xf32> to vector<16x128xf32>
      %47 = vector.shape_cast %44 : vector<16x128xf32> to vector<1x16x128xf32>
      tpu.vector_store %arg4[%c0_19, %c0_20, %c0_21], %47 {strides = array<i32>} : memref<1x16x128xf32, #tpu.memory_space<vmem>>, vector<1x16x128xf32>,
    } else {
    }
    %c0 = arith.constant 0 : index
    %c0_1 = arith.constant 0 : index
    %3 = vector.load %arg2[%c0, %c0_1] : memref<16x128xf32, #tpu.memory_space<vmem>>, vector<16x128xf32>
    %c0_2 = arith.constant 0 : index
    %c0_3 = arith.constant 0 : index
    %4 = vector.load %arg3[%c0_2, %c0_3] : memref<16x128xf32, #tpu.memory_space<vmem>>, vector<16x128xf32>
    %5 = arith.mulf %3, %4 : vector<16x128xf32>
    %6 = math.absf %3 : vector<16x128xf32>
    %cst = arith.constant 0.000000e+00 : f32
    %7 = vector.broadcast %cst : f32 to vector<16x128xf32>
    %8 = arith.subf %7, %6 : vector<16x128xf32>
    %9 = math.exp %8 : vector<16x128xf32>
    %cst_4 = arith.constant 0.000000e+00 : f32
    %10 = vector.broadcast %cst_4 : f32 to vector<16x128xf32>
    %11 = arith.maximumf %3, %10 : vector<16x128xf32>
    %12 = arith.subf %11, %5 : vector<16x128xf32>
    %13 = math.log1p %9 : vector<16x128xf32>
    %14 = arith.addf %12, %13 : vector<16x128xf32>
    %cst_5 = arith.constant 2.000000e+00 : f32
    %15 = vector.broadcast %cst_5 : f32 to vector<16x128xf32>
    %16 = arith.mulf %15, %5 : vector<16x128xf32>
    %17 = arith.subf %3, %16 : vector<16x128xf32>
    %18 = math.absf %17 : vector<16x128xf32>
    %cst_6 = arith.constant 0.000000e+00 : f32
    %19 = vector.broadcast %cst_6 : f32 to vector<16x128xf32>
    %20 = arith.subf %19, %18 : vector<16x128xf32>
    %21 = math.exp %20 : vector<16x128xf32>
    %cst_7 = arith.constant 1.000000e+00 : f32
    %22 = vector.broadcast %cst_7 : f32 to vector<16x128xf32>
    %23 = arith.addf %22, %21 : vector<16x128xf32>
    %24 = tpu.reciprocal %23 {approx = true} : vector<16x128xf32> -> vector<16x128xf32>
    %25 = arith.mulf %23, %24 : vector<16x128xf32>
    %cst_8 = arith.constant 2.000000e+00 : f32
    %26 = vector.broadcast %cst_8 : f32 to vector<16x128xf32>
    %27 = arith.subf %26, %25 : vector<16x128xf32>
    %28 = arith.mulf %24, %27 : vector<16x128xf32>
    %cst_9 = arith.constant 0.000000e+00 : f32
    %29 = vector.broadcast %cst_9 : f32 to vector<16x128xf32>
    %30 = arith.cmpf olt, %17, %29 : vector<16x128xf32>
    %cst_10 = arith.constant 1.000000e+00 : f32
    %31 = vector.broadcast %cst_10 : f32 to vector<16x128xf32>
    %32 = arith.select %30, %21, %31 : vector<16x128xi1>, vector<16x128xf32>
    %33 = arith.mulf %32, %28 : vector<16x128xf32>
    %34 = arith.mulf %33, %33 : vector<16x128xf32>
    %35 = arith.mulf %34, %14 : vector<16x128xf32>
    %c0_11 = arith.constant 0 : index
    %c0_12 = arith.constant 0 : index
    %c0_13 = arith.constant 0 : index
    %36 = vector.load %arg4[%c0_11, %c0_12, %c0_13] : memref<1x16x128xf32, #tpu.memory_space<vmem>>, vector<1x16x128xf32>
    %37 = vector.shape_cast %36 : vector<1x16x128xf32> to vector<16x128xf32>
    %38 = vector.shape_cast %35 : vector<16x128xf32> to vector<1x16x128xf32>
    %cst_14 = arith.constant dense<0.000000e+00> : vector<16x128xf32>
    %39 = vector.multi_reduction <add>, %38, %cst_14 [0] : vector<1x16x128xf32> to vector<16x128xf32>
    %40 = arith.addf %37, %39 : vector<16x128xf32>
    %c0_15 = arith.constant 0 : index
    %c0_16 = arith.constant 0 : index
    %c0_17 = arith.constant 0 : index
    %41 = vector.load %arg4[%c0_15, %c0_16, %c0_17] : memref<1x16x128xf32, #tpu.memory_space<vmem>>, vector<1x16x128xf32>
    %42 = vector.shape_cast %41 : vector<1x16x128xf32> to vector<16x128xf32>
    %43 = vector.shape_cast %40 : vector<16x128xf32> to vector<1x16x128xf32>
    tpu.vector_store %arg4[%c0_15, %c0_16, %c0_17], %43 {strides = array<i32>} : memref<1x16x128xf32, #tpu.memory_space<vmem>>, vector<1x16x128xf32>,
    return
  }
  func.func @transform_0(%arg0: i32, %arg1: i32) -> (i32, i32) {
    %c1_i32 = arith.constant 1 : i32
    %0 = arith.muli %arg0, %c1_i32 : i32
    %1 = arith.addi %0, %arg1 : i32
    %c0_i32 = arith.constant 0 : i32
    %c0_i32_0 = arith.constant 0 : i32
    return %1, %c0_i32 : i32, i32
  }
  func.func @transform_1(%arg0: i32, %arg1: i32) -> (i32, i32) {
    %c1_i32 = arith.constant 1 : i32
    %0 = arith.muli %arg0, %c1_i32 : i32
    %1 = arith.addi %0, %arg1 : i32
    %c0_i32 = arith.constant 0 : i32
    %c0_i32_0 = arith.constant 0 : i32
    return %1, %c0_i32 : i32, i32
  }
  func.func @transform_2(%arg0: i32, %arg1: i32) -> (i32, i32, i32) {
    %c0_i32 = arith.constant 0 : i32
    %c0_i32_0 = arith.constant 0 : i32
    %c0_i32_1 = arith.constant 0 : i32
    return %arg0, %c0_i32, %c0_i32_0 : i32, i32, i32
  }
}

</mosaic_0001>

<llo_original>
// kernel: tpu_custom_call.1
$region0: #{tpu_custom_call.1}
  #allocation0 [shape = 'u32[]', space=smem, size = 0x4, offset = 0x4, fixed_abs, tag = 'smem constant byte address 0x4 - core index']
  #allocation1 [shape = 'u32[72,128]{1,0:T(1,128)}', space=vmem, size = 0x9000, scoped, tag = 'internal scratch']
  %s0 = inlined_call_operand.hbm [shape: f32[16,128], index: 0, kind: input, shape index: {}]
  %s1 = inlined_call_operand.hbm [shape: f32[16,128], index: 1, kind: input, shape index: {}]
  %s2 = inlined_call_operand.hbm [shape: f32[1,16,128], index: 2, kind: output, shape index: {}]
  %s3 = sld [smem:[#allocation0]]
  $region30: #{tpu_custom_call.1} parent=0
    _
  %s5 = ssub.s32 1, %s3
  %s6 = scalar_select 0, %s5, %s3
  $region1: #{tpu_custom_call.1} parent=0
    #allocation2 [shape = 'u8[8192]{0}', space=vmem, size = 0x2000, scoped, tag = 'input window, operand 0, single buffered']
    #allocation3 [shape = 's32[1]{0}', space=sflag, size = 0x4, scoped, tag = 'scoped memory for tpu_custom_call.1']
    #allocation4 [shape = 's32[1]{0}', space=sflag, size = 0x4, scoped, tag = 'scoped memory for tpu_custom_call.1']
    #allocation5 [shape = 'u8[8192]{0}', space=vmem, size = 0x2000, scoped, tag = 'input window, operand 1, single buffered']
    #allocation6 [shape = 's32[1]{0}', space=sflag, size = 0x4, scoped, tag = 'scoped memory for tpu_custom_call.1']
    #allocation7 [shape = 'u8[8192]{0}', space=vmem, size = 0x2000, scoped, tag = 'output window, operand 0, single buffered']
    %7 = vsyncpa [#allocation3], 0
    %8 = vsyncpa [#allocation6], 0
    %9 = vsyncpa [#allocation4], 0
    // Predicated region
    $region2: #{tpu_custom_call.1} parent=1 // pred_check
      _
    $region3: #{tpu_custom_call.1} parent=1 // pred_check_branch
      %11 = sbr.rel (0) target = $region5
    $region4: #{tpu_custom_call.1} parent=1 // pred_region
      %s12 = sadd.s32 0, 0
      %s13 = smul.u32 2, %s12
      %15 = vsyncadd [#allocation3], 0
      %s16 = smul.addr %s13, 8
      %s17 = scalar_lea.hbm %s0, %s16
      %s18 = sshll.u32 %s17, 4
      %s19 = int_to_ptr.hbm [resolvable:$true] %s18
      %s20 = sshll.u32 [#allocation2], 4
      %s21 = int_to_ptr.vmem [resolvable:$true] %s20
      %26 = dma.hbm_to_vmem [thread:$0]  %s19, 256, %s21, [#allocation3], 128, 128, 8
    $region5: #{tpu_custom_call.1} parent=1 // pred_fallthru
      _
    // Predicated region
    $region6: #{tpu_custom_call.1} parent=1 // pred_check
      _
    $region7: #{tpu_custom_call.1} parent=1 // pred_check_branch
      %28 = sbr.rel (0) target = $region9
    $region8: #{tpu_custom_call.1} parent=1 // pred_region
      %s29 = sadd.s32 0, 0
      %s30 = smul.u32 2, %s29
      %32 = vsyncadd [#allocation6], 0
      %s33 = smul.addr %s30, 8
      %s34 = scalar_lea.hbm %s1, %s33
      %s35 = sshll.u32 %s34, 4
      %s36 = int_to_ptr.hbm [resolvable:$true] %s35
      %s37 = sshll.u32 [#allocation5], 4
      %s38 = int_to_ptr.vmem [resolvable:$true] %s37
      %43 = dma.hbm_to_vmem [thread:$0]  %s36, 256, %s38, [#allocation6], 128, 128, 8
    $region9: #{tpu_custom_call.1} parent=1 // pred_fallthru
      _
    // Predicated region
    $region10: #{tpu_custom_call.1} parent=1 // pred_check
      _
    $region11: #{tpu_custom_call.1} parent=1 // pred_check_branch
      %45 = sbr.rel (0) target = $region13
    $region12: #{tpu_custom_call.1} parent=1 // pred_region
      %47 = dma.done [#allocation3], 256
    $region13: #{tpu_custom_call.1} parent=1 // pred_fallthru
      _
    // Predicated region
    $region14: #{tpu_custom_call.1} parent=1 // pred_check
      _
    $region15: #{tpu_custom_call.1} parent=1 // pred_check_branch
      %49 = sbr.rel (0) target = $region17
    $region16: #{tpu_custom_call.1} parent=1 // pred_region
      %51 = dma.done [#allocation6], 256
    $region17: #{tpu_custom_call.1} parent=1 // pred_fallthru
      _
    %s52 = sadd.s32 0, 0
    %s53 = smul.u32 2, %s52
    %s54 = sadd.s32 0, 0
    %s55 = smul.u32 2, %s54
    %p56 = scmp.eq.s32.totalorder 0, 0
    // Predicated region
    $region18: #{tpu_custom_call.1} parent=1 // pred_check
      %p57 = pneg %p56
    $region19: #{tpu_custom_call.1} parent=1 // pred_check_branch
      %59 = sbr.rel (%p57) target = $region21
    $region20: #{tpu_custom_call.1} parent=1 // pred_region
      %60 = vst [vmem:[#allocation7] sm:$0xff] 0.0
      %61 = vst [vmem:[#allocation7 + $0x8] sm:$0xff] 0.0
    $region21: #{tpu_custom_call.1} parent=1 // pred_fallthru
      _
    %v62 = vld [vmem:[#allocation2] sm:$0xff]
    %v63 = vld [vmem:[#allocation2 + $0x8] sm:$0xff]
    %v64 = vld [vmem:[#allocation5] sm:$0xff]
    %v65 = vld [vmem:[#allocation5 + $0x8] sm:$0xff]
    %v66 = vmul.f32 %v62, %v64
    %v67 = vmul.f32 %v63, %v65
    %v68 = vand.u32 2147483647, %v62
    %v69 = vand.u32 2147483647, %v63
    %v70 = vsub.f32 0.0, %v68
    %v71 = vsub.f32 0.0, %v69
    %v72 = vmul.f32 %v70, 1.442695
    %v73 = vpow.pop %v72
    %v74 = vmul.f32 %v71, 1.442695
    %v75 = vpow.pop %v74
    %v76 = vmax.f32 %v62, 0.0
    %v77 = vmax.f32 %v63, 0.0
    %v78 = vsub.f32 %v76, %v66
    %v79 = vsub.f32 %v77, %v67
    %v80 = vadd.f32 %v73, 1.0
    %v81 = vlog2.pop %v80
    %v82 = vmul.f32 %v81, 0.6931472
    %v83 = vmul.f32 -0.5, %v73
    %v84 = vadd.f32 %v83, 1.0
    %v85 = vmul.f32 %v84, %v73
    %v86 = vand.u32 2147483647, %v73
    %vm87 = vcmp.lt.f32.partialorder %v86, 0.0004427343
    %v88 = vsel %vm87, %v85, %v82
    %v89 = vadd.f32 %v75, 1.0
    %v90 = vlog2.pop %v89
    %v91 = vmul.f32 %v90, 0.6931472
    %v92 = vmul.f32 -0.5, %v75
    %v93 = vadd.f32 %v92, 1.0
    %v94 = vmul.f32 %v93, %v75
    %v95 = vand.u32 2147483647, %v75
    %vm96 = vcmp.lt.f32.partialorder %v95, 0.0004427343
    %v97 = vsel %vm96, %v94, %v91
    %v98 = vadd.f32 %v78, %v88
    %v99 = vadd.f32 %v79, %v97
    %v100 = vmul.f32 %v66, 2.0
    %v101 = vmul.f32 %v67, 2.0
    %v102 = vsub.f32 %v62, %v100
    %v103 = vsub.f32 %v63, %v101
    %v104 = vand.u32 2147483647, %v102
    %v105 = vand.u32 2147483647, %v103
    %v106 = vsub.f32 0.0, %v104
    %v107 = vsub.f32 0.0, %v105
    %v108 = vmul.f32 %v106, 1.442695
    %v109 = vpow.pop %v108
    %v110 = vmul.f32 %v107, 1.442695
    %v111 = vpow.pop %v110
    %v112 = vadd.f32 %v109, 1.0
    %v113 = vadd.f32 %v111, 1.0
    %v114 = vrcp.pop %v112
    %v115 = vrcp.pop %v113
    %v116 = vmul.f32 %v112, %v114
    %v117 = vmul.f32 %v113, %v115
    %v118 = vsub.f32 2.0, %v116
    %v119 = vsub.f32 2.0, %v117
    %v120 = vmul.f32 %v114, %v118
    %v121 = vmul.f32 %v115, %v119
    %vm122 = vcmp.lt.f32.partialorder %v102, 0.0
    %vm123 = vcmp.lt.f32.partialorder %v103, 0.0
    %v124 = vsel %vm122, %v109, 1.0
    %v125 = vsel %vm123, %v111, 1.0
    %v126 = vmul.f32 %v124, %v120
    %v127 = vmul.f32 %v125, %v121
    %v128 = vmul.f32 %v126, %v126
    %v129 = vmul.f32 %v127, %v127
    %v130 = vmul.f32 %v128, %v98
    %v131 = vmul.f32 %v129, %v99
    %v132 = vld [vmem:[#allocation7] sm:$0xff]
    %v133 = vld [vmem:[#allocation7 + $0x8] sm:$0xff]
    %v134 = vadd.f32 %v130, 0.0
    %v135 = vadd.f32 %v131, 0.0
    %v136 = vadd.f32 %v132, %v134
    %v137 = vadd.f32 %v133, %v135
    %138 = vst [vmem:[#allocation7] sm:$0xff] %v136
    %139 = vst [vmem:[#allocation7 + $0x8] sm:$0xff] %v137
    // Predicated region
    $region22: #{tpu_custom_call.1} parent=1 // pred_check
      _
    $region23: #{tpu_custom_call.1} parent=1 // pred_check_branch
      %141 = sbr.rel (0) target = $region25
    $region24: #{tpu_custom_call.1} parent=1 // pred_region
      %143 = vsyncadd [#allocation4], 0
      %s144 = sshll.u32 [#allocation7], 4
      %s145 = int_to_ptr.vmem [resolvable:$true] %s144
      %s146 = sshll.u32 %s2, 4
      %s147 = int_to_ptr.hbm [resolvable:$true] %s146
      %152 = dma.vmem_to_hbm [thread:$0]  %s145, 256, %s147, [#allocation4], 128, 128, 8
    $region25: #{tpu_custom_call.1} parent=1 // pred_fallthru
      _
    // Predicated region
    $region26: #{tpu_custom_call.1} parent=1 // pred_check
      _
    $region27: #{tpu_custom_call.1} parent=1 // pred_check_branch
      %154 = sbr.rel (0) target = $region29
    $region28: #{tpu_custom_call.1} parent=1 // pred_region
      %156 = dma.done [#allocation4], 256
    $region29: #{tpu_custom_call.1} parent=1 // pred_fallthru
      _
    %157 = vsyncpa [#allocation3], 1
    %158 = vsyncpa [#allocation6], 1
    %159 = vsyncpa [#allocation4], 1

</llo_original>
